<compile_context>
chip_gen: v7x
topology: tpu7x:2x2x1
jax: 0.10.0
libtpu: 0.0.40
codegen_flags: <defaults>
</compile_context>

<pallas_src>
import functools

import jax
import jax.numpy as jnp
from jax.experimental import pallas as pl
from jax.experimental.pallas import tpu as pltpu


def _softplus_stable(x):
    # numerically stable softplus: max(x, 0) + log1p(exp(-|x|))
    return jnp.maximum(x, 0.0) + jnp.log1p(jnp.exp(-jnp.abs(x)))


def _dense_normal_kernel(x_ref, w_ref, b_ref, o_ref):
    # Linear: (TB, in_dim) @ (in_dim, 2*out_dim) + (1, 2*out_dim)  -- MXU path,
    # f32 accumulation regardless of input dtype.
    bias = b_ref[...]  # read/broadcast the bias once
    out = jnp.dot(x_ref[...], w_ref[...],
                  preferred_element_type=jnp.float32) + bias

    two_d = out.shape[-1]
    d = two_d // 2

    if d % 128 == 0:
        # Lane-aligned halves: slicing at a 128-lane boundary is a free vreg
        # select, softplus only touches the sigma half, and both stores are
        # unmasked lane-dense writes.
        mu = out[:, :d]
        sigma = _softplus_stable(out[:, d:]) + 1e-6
        o_ref[:, :d] = mu.astype(o_ref.dtype)
        o_ref[:, d:] = sigma.astype(o_ref.dtype)
    else:
        # Fallback for non-128-multiple out_dim: a column mask reproduces
        # chunk(2, -1) + softplus + cat exactly without unaligned slicing.
        col = jax.lax.broadcasted_iota(jnp.int32, out.shape, dimension=1)
        sp = _softplus_stable(out) + 1e-6
        o_ref[...] = jnp.where(col >= d, sp, out).astype(o_ref.dtype)


def _pick_batch_tile(B, in_dim, two_out, itemsize):
    """Largest batch tile (multiple of 8, <=512) fitting a ~12 MiB VMEM budget."""
    budget = 12 * 1024 * 1024
    w_bytes = 2 * in_dim * two_out * itemsize        # double-buffered W block
    per_row = 2 * (in_dim + two_out) * itemsize      # double-buffered x + out rows
    tb = max(8, (budget - w_bytes) // per_row)
    tb = int(min(tb, 512, B))
    if tb >= B:
        return B
    return max(8, (tb // 8) * 8)


@functools.partial(jax.jit, static_argnames=("tb",))
def dense_normal(x, w, b, *, tb=None):
    """x: (B, in_dim), w: (in_dim, 2*out_dim), b: (1, 2*out_dim)."""
    B, in_dim = x.shape
    two_out = w.shape[1]
    if tb is None:
        tb = _pick_batch_tile(B, in_dim, two_out, x.dtype.itemsize)

    grid = (pl.cdiv(B, tb),)
    return pl.pallas_call(
        _dense_normal_kernel,
        out_shape=jax.ShapeDtypeStruct((B, two_out), x.dtype),
        grid=grid,
        in_specs=[
            pl.BlockSpec((tb, in_dim), lambda i: (i, 0)),       # x: tiled over batch
            pl.BlockSpec((in_dim, two_out), lambda i: (0, 0)),  # W: resident
            pl.BlockSpec((1, two_out), lambda i: (0, 0)),       # b: resident
        ],
        out_specs=pl.BlockSpec((tb, two_out), lambda i: (i, 0)),
        compiler_params=pltpu.CompilerParams(
            dimension_semantics=("parallel",)),
    )(x, w, b)


def dense_normal_ref(x, w, b):
    out = x @ w + b
    d = out.shape[-1] // 2
    mu, logsigma = out[:, :d], out[:, d:]
    sigma = jax.nn.softplus(logsigma) + 1e-6
    return jnp.concatenate([mu, sigma], axis=-1)


if __name__ == "__main__":
    key = jax.random.PRNGKey(0)

    def make_case(k, batch, in_dim, out_dim):
        kx, kw, kb = jax.random.split(k, 3)
        x = jax.random.normal(kx, (batch, in_dim), dtype=jnp.float32)
        # Deterministic init mimicking nn.Linear's uniform(-1/sqrt(in), 1/sqrt(in)).
        bound = 1.0 / jnp.sqrt(jnp.float32(in_dim))
        w = jax.random.uniform(kw, (in_dim, 2 * out_dim), dtype=jnp.float32,
                               minval=-bound, maxval=bound)
        b = jax.random.uniform(kb, (1, 2 * out_dim), dtype=jnp.float32,
                               minval=-bound, maxval=bound)
        return x, w, b

    k1, k2 = jax.random.split(key)

    # Case 1: lane-aligned out_dim (fast path: lane-dense halves, tiled batch grid).
    x1, w1, b1 = make_case(k1, batch=256, in_dim=128, out_dim=128)
    out1 = jax.block_until_ready(dense_normal(x1, w1, b1, tb=128))  # 2 grid steps
    ref1 = dense_normal_ref(x1, w1, b1)
    assert out1.shape == (256, 256)
    assert jnp.allclose(out1, ref1, atol=1e-5, rtol=1e-5), "mismatch (aligned case)"

    # Case 2: original toy shape (out_dim=16 -> column-mask fallback path).
    x2, w2, b2 = make_case(k2, batch=8, in_dim=32, out_dim=16)
    out2 = jax.block_until_ready(dense_normal(x2, w2, b2))
    ref2 = dense_normal_ref(x2, w2, b2)
    assert out2.shape == (8, 32)
    assert jnp.allclose(out2, ref2, atol=1e-5, rtol=1e-5), "mismatch (toy case)"

    print("KERNEL_OK")
</pallas_src>

<mosaic_0001>
module attributes {stable_mosaic.version = 11 : i64} {
  func.func @_dense_normal_kernel(%arg0: i32, %arg1: memref<128x128xf32, #tpu.memory_space<vmem>>, %arg2: memref<128x256xf32, #tpu.memory_space<vmem>>, %arg3: memref<1x256xf32, #tpu.memory_space<vmem>>, %arg4: memref<128x256xf32, #tpu.memory_space<vmem>>) attributes {dimension_semantics = [#tpu.dimension_semantics<parallel>], iteration_bounds = array<i64: 2>, scalar_prefetch = 0 : i64, scratch_operands = 0 : i64, tpu.core_type = #tpu.core_type<tc>, window_params = [{transform_indices = @transform_0, window_bounds = array<i64: 128, 128>}, {pipeline_mode = #tpu.pipeline_mode<synchronous>, transform_indices = @transform_1, window_bounds = array<i64: 128, 256>}, {pipeline_mode = #tpu.pipeline_mode<synchronous>, transform_indices = @transform_2, window_bounds = array<i64: 1, 256>}, {transform_indices = @transform_3, window_bounds = array<i64: 128, 256>}]} {
    %c0 = arith.constant 0 : index
    %c0_0 = arith.constant 0 : index
    %0 = vector.load %arg3[%c0, %c0_0] : memref<1x256xf32, #tpu.memory_space<vmem>>, vector<1x256xf32>
    %c0_1 = arith.constant 0 : index
    %c0_2 = arith.constant 0 : index
    %1 = vector.load %arg1[%c0_1, %c0_2] : memref<128x128xf32, #tpu.memory_space<vmem>>, vector<128x128xf32>
    %c0_3 = arith.constant 0 : index
    %c0_4 = arith.constant 0 : index
    %2 = vector.load %arg2[%c0_3, %c0_4] : memref<128x256xf32, #tpu.memory_space<vmem>>, vector<128x256xf32>
    %cst = arith.constant dense<0.000000e+00> : vector<128x256xf32>
    %3 = tpu.matmul %1, %2, %cst {dimension_numbers = #tpu.dot_dimension_numbers<[1], [0], [0], [1], [0, 0, 1, 1], [], []>} : vector<128x128xf32>, vector<128x256xf32>, vector<128x256xf32> -> vector<128x256xf32>
    %4 = vector.broadcast %0 : vector<1x256xf32> to vector<128x256xf32>
    %5 = arith.addf %3, %4 : vector<128x256xf32>
    %6 = vector.extract_strided_slice %5 {offsets = [0, 0], sizes = [128, 128], strides = [1, 1]} : vector<128x256xf32> to vector<128x128xf32>
    %7 = vector.extract_strided_slice %5 {offsets = [0, 128], sizes = [128, 128], strides = [1, 1]} : vector<128x256xf32> to vector<128x128xf32>
    %cst_5 = arith.constant 0.000000e+00 : f32
    %8 = vector.broadcast %cst_5 : f32 to vector<128x128xf32>
    %9 = arith.maximumf %7, %8 : vector<128x128xf32>
    %10 = math.absf %7 : vector<128x128xf32>
    %cst_6 = arith.constant 0.000000e+00 : f32
    %11 = vector.broadcast %cst_6 : f32 to vector<128x128xf32>
    %12 = arith.subf %11, %10 : vector<128x128xf32>
    %13 = math.exp %12 : vector<128x128xf32>
    %14 = math.log1p %13 : vector<128x128xf32>
    %15 = arith.addf %9, %14 : vector<128x128xf32>
    %cst_7 = arith.constant 9.99999997E-7 : f32
    %16 = vector.broadcast %cst_7 : f32 to vector<128x128xf32>
    %17 = arith.addf %15, %16 : vector<128x128xf32>
    %c0_8 = arith.constant 0 : index
    %c0_9 = arith.constant 0 : index
    %18 = vector.load %arg4[%c0_8, %c0_9] : memref<128x256xf32, #tpu.memory_space<vmem>>, vector<128x128xf32>
    tpu.vector_store %arg4[%c0_8, %c0_9], %6 {strides = array<i32>} : memref<128x256xf32, #tpu.memory_space<vmem>>, vector<128x128xf32>,
    %c0_10 = arith.constant 0 : index
    %c128 = arith.constant 128 : index
    %19 = vector.load %arg4[%c0_10, %c128] : memref<128x256xf32, #tpu.memory_space<vmem>>, vector<128x128xf32>
    tpu.vector_store %arg4[%c0_10, %c128], %17 {strides = array<i32>} : memref<128x256xf32, #tpu.memory_space<vmem>>, vector<128x128xf32>,
    return
  }
  func.func @transform_0(%arg0: i32) -> (i32, i32) {
    %c0_i32 = arith.constant 0 : i32
    %c0_i32_0 = arith.constant 0 : i32
    return %arg0, %c0_i32 : i32, i32
  }
  func.func @transform_1(%arg0: i32) -> (i32, i32) {
    %c0_i32 = arith.constant 0 : i32
    %c0_i32_0 = arith.constant 0 : i32
    %c0_i32_1 = arith.constant 0 : i32
    return %c0_i32, %c0_i32_0 : i32, i32
  }
  func.func @transform_2(%arg0: i32) -> (i32, i32) {
    %c0_i32 = arith.constant 0 : i32
    %c0_i32_0 = arith.constant 0 : i32
    %c0_i32_1 = arith.constant 0 : i32
    return %c0_i32, %c0_i32_0 : i32, i32
  }
  func.func @transform_3(%arg0: i32) -> (i32, i32) {
    %c0_i32 = arith.constant 0 : i32
    %c0_i32_0 = arith.constant 0 : i32
    return %arg0, %c0_i32 : i32, i32
  }
}

</mosaic_0001>

<llo_original>
// kernel: dense_normal.1
$region0: #{dense_normal.1}
  #allocation0 [shape = 'u32[]', space=smem, size = 0x4, offset = 0x4, fixed_abs, tag = 'smem constant byte address 0x4 - core index']
  #allocation1 [shape = 'u32[144,128]{1,0:T(1,128)}', space=vmem, size = 0x12000, scoped, tag = 'internal scratch']
  %s0 = inlined_call_operand.hbm [shape: f32[256,128], index: 0, kind: input, shape index: {}]
  %s1 = inlined_call_operand.hbm [shape: f32[128,256], index: 1, kind: input, shape index: {}]
  %s2 = inlined_call_operand.vmem [shape: f32[1,256], index: 2, kind: input, shape index: {}]
  %s3 = inlined_call_operand.hbm [shape: f32[256,256], index: 3, kind: output, shape index: {}]
  %s4 = sld [smem:[#allocation0]]
  $region53: #{dense_normal.1} parent=0
    _
  %s6 = ssub.s32 1, %s4
  %s7 = scalar_select 0, %s6, %s4
  $region1: #{dense_normal.1} parent=0
    #allocation2 [shape = 'u8[131072]{0}', space=vmem, size = 0x20000, scoped, tag = 'input window, operand 0']
    #allocation3 [shape = 's32[2]{0}', space=sflag, size = 0x8, scoped, tag = 'scoped memory for dense_normal.1']
    #allocation4 [shape = 's32[2]{0}', space=sflag, size = 0x8, scoped, tag = 'scoped memory for dense_normal.1']
    #allocation5 [shape = 'u8[131072]{0}', space=vmem, size = 0x20000, scoped, tag = 'input window, operand 1, single buffered']
    #allocation6 [shape = 's32[1]{0}', space=sflag, size = 0x4, scoped, tag = 'scoped memory for dense_normal.1']
    #allocation7 [shape = 'u8[262144]{0}', space=vmem, size = 0x40000, scoped, tag = 'output window, operand 0']
    %8 = vsyncpa [#allocation3], 0
    %s9 = scalar_lea.sflag [#allocation3], 1
    %10 = vsyncpa %s9, 0
    %11 = vsyncpa [#allocation6], 0
    %12 = vsyncpa [#allocation4], 0
    %s13 = scalar_lea.sflag [#allocation4], 1
    %14 = vsyncpa %s13, 0
    loop: start=0, step=1, limit=4
    $region2: #{dense_normal.1} parent=1 // loop_pre_header
      _
    $region3: #{dense_normal.1} parent=1 // loop_header
      %s16 = sphi 0, %s20
      %p17 = scmp.ge.s32.totalorder %s16, 4
      %s26 = sphi 0, %s28
      %s29 = sphi 0, %s26
      %s30 = sphi 0, %s29
      %s46 = sphi 0, %s30
      %s50 = sphi 0, %s50
      %s52 = sphi 0, %s50
      %s53 = sphi 0, %s52
      %s67 = sphi 0, %s53
      %s71 = sphi 0, %s71
      %s73 = sphi 0, %s71
      %s74 = sphi 0, %s73
      %s88 = sphi 0, %s74
      %s94 = sphi 0, %s96
      %s97 = sphi 0, %s94
      %s98 = sphi 0, %s97
      %s114 = sphi 0, %s98
    $region4: #{dense_normal.1} parent=1 // loop_header_branch
      %19 = sbr.rel (%p17) target = $region8
    $region5: #{dense_normal.1} parent=1 // loop_body
      %s21 = ssub.s32 %s16, 1
      %s22 = ssub.s32 %s16, 2
      %s23 = sadd.s32 %s16, 1
      %s24 = ssub.s32 %s16, %s23
      %p25 = scmp.eq.s32.totalorder %s24, 0
      %s27 = sadd.s32 %s26, 1
      %s28 = scalar_select %p25, %s26, %s27
      %p31 = pneg %p25
      %p32 = scmp.eq.s32.totalorder %s16, 1
      %p33 = por %p31, %p32
      %p34 = scmp.ne.s32.totalorder %s26, %s29
      %p35 = scmp.eq.s32.totalorder %s16, 0
      %p36 = por %p34, %p35
      %p37 = scmp.ne.s32.totalorder %s26, %s29
      %p38 = scmp.eq.s32.totalorder %s21, 1
      %p39 = por %p37, %p38
      %p40 = scmp.ne.s32.totalorder %s29, %s30
      %p41 = scmp.eq.s32.totalorder %s21, 0
      %p42 = por %p40, %p41
      %p43 = scmp.ne.s32.totalorder %s29, %s30
      %p44 = scmp.eq.s32.totalorder %s22, 1
      %p45 = por %p43, %p44
      %p47 = scmp.ne.s32.totalorder %s30, %s46
      %p48 = scmp.eq.s32.totalorder %s22, 0
      %p49 = por %p47, %p48
      %s51 = sadd.s32 %s50, 1
      %p54 = scmp.eq.s32.totalorder %s16, 1
      %p55 = scmp.ne.s32.totalorder %s50, %s52
      %p56 = scmp.eq.s32.totalorder %s16, 0
      %p57 = por %p55, %p56
      %p58 = scmp.ne.s32.totalorder %s50, %s52
      %p59 = scmp.eq.s32.totalorder %s21, 1
      %p60 = por %p58, %p59
      %p61 = scmp.ne.s32.totalorder %s52, %s53
      %p62 = scmp.eq.s32.totalorder %s21, 0
      %p63 = por %p61, %p62
      %p64 = scmp.ne.s32.totalorder %s52, %s53
      %p65 = scmp.eq.s32.totalorder %s22, 1
      %p66 = por %p64, %p65
      %p68 = scmp.ne.s32.totalorder %s53, %s67
      %p69 = scmp.eq.s32.totalorder %s22, 0
      %p70 = por %p68, %p69
      %s72 = sadd.s32 %s71, 1
      %p75 = scmp.eq.s32.totalorder %s16, 1
      %p76 = scmp.ne.s32.totalorder %s71, %s73
      %p77 = scmp.eq.s32.totalorder %s16, 0
      %p78 = por %p76, %p77
      %p79 = scmp.ne.s32.totalorder %s71, %s73
      %p80 = scmp.eq.s32.totalorder %s21, 1
      %p81 = por %p79, %p80
      %p82 = scmp.ne.s32.totalorder %s73, %s74
      %p83 = scmp.eq.s32.totalorder %s21, 0
      %p84 = por %p82, %p83
      %p85 = scmp.ne.s32.totalorder %s73, %s74
      %p86 = scmp.eq.s32.totalorder %s22, 1
      %p87 = por %p85, %p86
      %p89 = scmp.ne.s32.totalorder %s74, %s88
      %p90 = scmp.eq.s32.totalorder %s22, 0
      %p91 = por %p89, %p90
      %s92 = ssub.s32 %s16, %s23
      %p93 = scmp.eq.s32.totalorder %s92, 0
      %s95 = sadd.s32 %s94, 1
      %s96 = scalar_select %p93, %s94, %s95
      %p99 = pneg %p93
      %p100 = scmp.eq.s32.totalorder %s16, 1
      %p101 = por %p99, %p100
      %p102 = scmp.ne.s32.totalorder %s94, %s97
      %p103 = scmp.eq.s32.totalorder %s16, 0
      %p104 = por %p102, %p103
      %p105 = scmp.ne.s32.totalorder %s94, %s97
      %p106 = scmp.eq.s32.totalorder %s21, 1
      %p107 = por %p105, %p106
      %p108 = scmp.ne.s32.totalorder %s97, %s98
      %p109 = scmp.eq.s32.totalorder %s21, 0
      %p110 = por %p108, %p109
      %p111 = scmp.ne.s32.totalorder %s97, %s98
      %p112 = scmp.eq.s32.totalorder %s22, 1
      %p113 = por %p111, %p112
      %p115 = scmp.ne.s32.totalorder %s98, %s114
      %p116 = scmp.eq.s32.totalorder %s22, 0
      %p117 = por %p115, %p116
      %p118 = scmp.le.s32.totalorder 1, %s16
      %p119 = scmp.lt.s32.totalorder %s16, 3
      %p120 = pnand %p118, %p119
      %p121 = pneg %p120
      // Predicated region
      $region9: #{dense_normal.1} parent=5 // pred_check
        _
      $region10: #{dense_normal.1} parent=5 // pred_check_branch
        %123 = sbr.rel (%p120) target = $region12
      $region11: #{dense_normal.1} parent=5 // pred_region
        %s124 = ssub.s32 %s16, 1
        // Predicated region
        $region13: #{dense_normal.1} parent=11 // pred_check
          %p125 = pneg %p63
        $region14: #{dense_normal.1} parent=11 // pred_check_branch
          %127 = sbr.rel (%p125) target = $region16
        $region15: #{dense_normal.1} parent=11 // pred_region
          %s129 = ssub.s32 4096, 4096
          %130 = vsyncadd [#allocation6], %s129
          %s131 = sshll.u32 [#allocation5], 4
          %s132 = int_to_ptr.vmem [resolvable:$true] %s131
          %137 = dma.hbm_to_vmem [thread:$0]  %s1, 4096, %s132, [#allocation6], 256, 256, 16
        $region16: #{dense_normal.1} parent=11 // pred_fallthru
          _
        // Predicated region
        $region17: #{dense_normal.1} parent=11 // pred_check
          %p138 = pneg %p84
        $region18: #{dense_normal.1} parent=11 // pred_check_branch
          %140 = sbr.rel (%p138) target = $region20
        $region19: #{dense_normal.1} parent=11 // pred_region
          _
        $region20: #{dense_normal.1} parent=11 // pred_fallthru
          _
      $region12: #{dense_normal.1} parent=5 // pred_fallthru
        _
      %p141 = scmp.lt.s32.totalorder %s16, 2
      // Predicated region
      $region21: #{dense_normal.1} parent=5 // pred_check
        %p142 = pneg %p141
      $region22: #{dense_normal.1} parent=5 // pred_check_branch
        %144 = sbr.rel (%p142) target = $region24
      $region23: #{dense_normal.1} parent=5 // pred_region
        // Predicated region
        $region25: #{dense_normal.1} parent=23 // pred_check
          %p145 = pneg %p36
        $region26: #{dense_normal.1} parent=23 // pred_check_branch
          %147 = sbr.rel (%p145) target = $region28
        $region27: #{dense_normal.1} parent=23 // pred_region
          %s148 = sand.u32 %s26, 1
          %s149 = scalar_lea.sflag [#allocation3], %s148
          %s150 = sand.u32 %s26, 1
          %s151 = smul.addr %s150, 128
          %s152 = scalar_lea.vmem [#allocation2], %s151
          %s153 = smul.u32 16, %s16
          %s155 = ssub.s32 2048, 2048
          %156 = vsyncadd %s149, %s155
          %s157 = smul.addr %s153, 128
          %s158 = scalar_lea.hbm %s0, %s157
          %s159 = sshll.u32 %s152, 4
          %s160 = int_to_ptr.vmem [resolvable:$true] %s159
          %165 = dma.hbm_to_vmem [thread:$0]  %s158, 2048, %s160, %s149, 128, 128, 8
        $region28: #{dense_normal.1} parent=23 // pred_fallthru
          _
      $region24: #{dense_normal.1} parent=5 // pred_fallthru
        _
      %p166 = scmp.le.s32.totalorder 1, %s16
      %p167 = scmp.lt.s32.totalorder %s16, 3
      %p168 = pnand %p166, %p167
      %p169 = pneg %p168
      // Predicated region
      $region29: #{dense_normal.1} parent=5 // pred_check
        _
      $region30: #{dense_normal.1} parent=5 // pred_check_branch
        %171 = sbr.rel (%p168) target = $region32
      $region31: #{dense_normal.1} parent=5 // pred_region
        %s172 = ssub.s32 %s16, 1
        %s173 = sand.u32 %s29, 1
        %s174 = scalar_lea.sflag [#allocation3], %s173
        %s175 = sand.u32 %s29, 1
        %s176 = smul.addr %s175, 128
        %s177 = scalar_lea.vmem [#allocation2], %s176
        // Predicated region
        $region33: #{dense_normal.1} parent=31 // pred_check
          %p178 = pneg %p42
        $region34: #{dense_normal.1} parent=31 // pred_check_branch
          %180 = sbr.rel (%p178) target = $region36
        $region35: #{dense_normal.1} parent=31 // pred_region
          %181 = dma.done %s174, 2048
        $region36: #{dense_normal.1} parent=31 // pred_fallthru
          _
        // Predicated region
        $region37: #{dense_normal.1} parent=31 // pred_check
          %p182 = pneg %p63
        $region38: #{dense_normal.1} parent=31 // pred_check_branch
          %184 = sbr.rel (%p182) target = $region40
        $region39: #{dense_normal.1} parent=31 // pred_region
          %185 = dma.done [#allocation6], 4096
        $region40: #{dense_normal.1} parent=31 // pred_fallthru
          _
        %s186 = sand.u32 %s29, 1
        %s187 = scalar_lea.sflag [#allocation3], %s186
        %s188 = sand.u32 %s29, 1
        %s189 = smul.addr %s188, 128
        %s190 = scalar_lea.vmem [#allocation2], %s189
        %p191 = pneg %p42
        %p192 = pneg %p39
        %p193 = pneg %p63
        %p194 = pneg %p60
        %p195 = pneg %p84
        %p196 = pneg %p81
        %p197 = pneg %p110
        %p198 = pneg %p107
        %s199 = sand.u32 %s97, 1
        %s200 = scalar_lea.sflag [#allocation4], %s199
        %s201 = sand.u32 %s97, 1
        %s202 = smul.addr %s201, 256
        %s203 = scalar_lea.vmem [#allocation7], %s202
        %s204 = smul.u32 16, %s21
        %s205 = smul.u32 16, %s21
        %v206 = vld [vmem:[%s2] sm:$0x3]
        %v207 = vld [vmem:[%s177] sm:$0xff]
        %v208 = vld [vmem:[%s177 + $0x8] sm:$0xff]
        %v209 = vld [vmem:[%s177 + $0x10] sm:$0xff]
        %v210 = vld [vmem:[%s177 + $0x18] sm:$0xff]
        %v211 = vld [vmem:[%s177 + $0x20] sm:$0xff]
        %v212 = vld [vmem:[%s177 + $0x28] sm:$0xff]
        %v213 = vld [vmem:[%s177 + $0x30] sm:$0xff]
        %v214 = vld [vmem:[%s177 + $0x38] sm:$0xff]
        %v215 = vld [vmem:[%s177 + $0x40] sm:$0xff]
        %v216 = vld [vmem:[%s177 + $0x48] sm:$0xff]
        %v217 = vld [vmem:[%s177 + $0x50] sm:$0xff]
        %v218 = vld [vmem:[%s177 + $0x58] sm:$0xff]
        %v219 = vld [vmem:[%s177 + $0x60] sm:$0xff]
        %v220 = vld [vmem:[%s177 + $0x68] sm:$0xff]
        %v221 = vld [vmem:[%s177 + $0x70] sm:$0xff]
        %v222 = vld [vmem:[%s177 + $0x78] sm:$0xff]
        %v223 = vld [vmem:[#allocation5] sm:$0xff]
        %v224 = vld [vmem:[#allocation5 + $0x8] sm:$0xff]
        %v225 = vld [vmem:[#allocation5 + $0x10] sm:$0xff]
        %v226 = vld [vmem:[#allocation5 + $0x18] sm:$0xff]
        %v227 = vld [vmem:[#allocation5 + $0x20] sm:$0xff]
        %v228 = vld [vmem:[#allocation5 + $0x28] sm:$0xff]
        %v229 = vld [vmem:[#allocation5 + $0x30] sm:$0xff]
        %v230 = vld [vmem:[#allocation5 + $0x38] sm:$0xff]
        %v231 = vld [vmem:[#allocation5 + $0x40] sm:$0xff]
        %v232 = vld [vmem:[#allocation5 + $0x48] sm:$0xff]
        %v233 = vld [vmem:[#allocation5 + $0x50] sm:$0xff]
        %v234 = vld [vmem:[#allocation5 + $0x58] sm:$0xff]
        %v235 = vld [vmem:[#allocation5 + $0x60] sm:$0xff]
        %v236 = vld [vmem:[#allocation5 + $0x68] sm:$0xff]
        %v237 = vld [vmem:[#allocation5 + $0x70] sm:$0xff]
        %v238 = vld [vmem:[#allocation5 + $0x78] sm:$0xff]
        %v239 = vld [vmem:[#allocation5 + $0x80] sm:$0xff]
        %v240 = vld [vmem:[#allocation5 + $0x88] sm:$0xff]
        %v241 = vld [vmem:[#allocation5 + $0x90] sm:$0xff]
        %v242 = vld [vmem:[#allocation5 + $0x98] sm:$0xff]
        %v243 = vld [vmem:[#allocation5 + $0xa0] sm:$0xff]
        %v244 = vld [vmem:[#allocation5 + $0xa8] sm:$0xff]
        %v245 = vld [vmem:[#allocation5 + $0xb0] sm:$0xff]
        %v246 = vld [vmem:[#allocation5 + $0xb8] sm:$0xff]
        %v247 = vld [vmem:[#allocation5 + $0xc0] sm:$0xff]
        %v248 = vld [vmem:[#allocation5 + $0xc8] sm:$0xff]
        %v249 = vld [vmem:[#allocation5 + $0xd0] sm:$0xff]
        %v250 = vld [vmem:[#allocation5 + $0xd8] sm:$0xff]
        %v251 = vld [vmem:[#allocation5 + $0xe0] sm:$0xff]
        %v252 = vld [vmem:[#allocation5 + $0xe8] sm:$0xff]
        %v253 = vld [vmem:[#allocation5 + $0xf0] sm:$0xff]
        %v254 = vld [vmem:[#allocation5 + $0xf8] sm:$0xff]
        %v256 = vlaneseq
        %v257 = vshrl.u32 %v256, 7
        %v258 = vsub.s32 0, %v257
        %v259 = vrot.slane %v206, %v258
        %v260 = vlaneseq
        %v261 = vshrl.u32 %v260, 7
        %v262 = vsub.s32 1, %v261
        %v263 = vrot.slane %v206, %v262
        %266 = vmatprep.subr.mxu0 %v224
        %267 = vmatpush1.msra.mxu0 %v223
        %268 = vmatprep.subr.mxu0 %v226
        %269 = vmatpush1.msra.mxu0 %v225
        %270 = vmatprep.subr.mxu0 %v228
        %271 = vmatpush1.msra.mxu0 %v227
        %272 = vmatprep.subr.mxu0 %v230
        %273 = vmatpush1.msra.mxu0 %v229
        %274 = vmatprep.subr.mxu0 %v232
        %275 = vmatpush1.msra.mxu0 %v231
        %276 = vmatprep.subr.mxu0 %v234
        %277 = vmatpush1.msra.mxu0 %v233
        %278 = vmatprep.subr.mxu0 %v236
        %279 = vmatpush1.msra.mxu0 %v235
        %280 = vmatprep.subr.mxu0 %v238
        %281 = vmatpush1.msra.mxu0 %v237
        %282 = vmatprep.subr.mxu0 %v240
        %283 = vmatpush1.msra.mxu0 %v239
        %284 = vmatprep.subr.mxu0 %v242
        %285 = vmatpush1.msra.mxu0 %v241
        %286 = vmatprep.subr.mxu0 %v244
        %287 = vmatpush1.msra.mxu0 %v243
        %288 = vmatprep.subr.mxu0 %v246
        %289 = vmatpush1.msra.mxu0 %v245
        %290 = vmatprep.subr.mxu0 %v248
        %291 = vmatpush1.msra.mxu0 %v247
        %292 = vmatprep.subr.mxu0 %v250
        %293 = vmatpush1.msra.mxu0 %v249
        %294 = vmatprep.subr.mxu0 %v252
        %295 = vmatpush1.msra.mxu0 %v251
        %296 = vmatprep.subr.mxu0 %v254
        %297 = vmatpush1.msra.mxu0 %v253
        %298 = vmatprep.subr.mxu0 0.0
        %299 = vmatpush1.msra.mxu0 0.0
        %300 = vmatprep.subr.mxu0 0.0
        %301 = vmatpush1.msra.mxu0 0.0
        %302 = vmatprep.subr.mxu0 0.0
        %303 = vmatpush1.msra.mxu0 0.0
        %304 = vmatprep.subr.mxu0 0.0
        %305 = vmatpush1.msra.mxu0 0.0
        %306 = vmatprep.subr.mxu0 0.0
        %307 = vmatpush1.msra.mxu0 0.0
        %308 = vmatprep.subr.mxu0 0.0
        %309 = vmatpush1.msra.mxu0 0.0
        %310 = vmatprep.subr.mxu0 0.0
        %311 = vmatpush1.msra.mxu0 0.0
        %312 = vmatprep.subr.mxu0 0.0
        %313 = vmatpush1.msra.mxu0 0.0
        %314 = vmatprep.subr.mxu0 0.0
        %315 = vmatpush1.msra.mxu0 0.0
        %316 = vmatprep.subr.mxu0 0.0
        %317 = vmatpush1.msra.mxu0 0.0
        %318 = vmatprep.subr.mxu0 0.0
        %319 = vmatpush1.msra.mxu0 0.0
        %320 = vmatprep.subr.mxu0 0.0
        %321 = vmatpush1.msra.mxu0 0.0
        %322 = vmatprep.subr.mxu0 0.0
        %323 = vmatpush1.msra.mxu0 0.0
        %324 = vmatprep.subr.mxu0 0.0
        %325 = vmatpush1.msra.mxu0 0.0
        %326 = vmatprep.subr.mxu0 0.0
        %327 = vmatpush1.msra.mxu0 0.0
        %328 = vmatprep.subr.mxu0 0.0
        %329 = vmatpush1.msra.mxu0 0.0
        %330 = vmatprep.mubr.f32.mxu0 0.0
        %331 = vmatmul.mubr.f32.gmra.mrb[0].mxu0 %v207
        %v332 = vpop.f32.mrb[0].mxu0
        %v333 = vadd.f32 %v259, %v332
        %v334 = vpop.f32.mrb[0].mxu0
        %v335 = vadd.f32 %v263, %v334
        %336 = vmatprep.mubr.f32.mxu0 0.0
        %337 = vmatmul.mubr.f32.gmra.mrb[0].mxu0 %v208
        %v338 = vpop.f32.mrb[0].mxu0
        %v339 = vadd.f32 %v259, %v338
        %v340 = vpop.f32.mrb[0].mxu0
        %v341 = vadd.f32 %v263, %v340
        %342 = vmatprep.mubr.f32.mxu0 0.0
        %343 = vmatmul.mubr.f32.gmra.mrb[0].mxu0 %v209
        %v344 = vpop.f32.mrb[0].mxu0
        %v345 = vadd.f32 %v259, %v344
        %v346 = vpop.f32.mrb[0].mxu0
        %v347 = vadd.f32 %v263, %v346
        %348 = vmatprep.mubr.f32.mxu0 0.0
        %349 = vmatmul.mubr.f32.gmra.mrb[0].mxu0 %v210
        %v350 = vpop.f32.mrb[0].mxu0
        %v351 = vadd.f32 %v259, %v350
        %v352 = vpop.f32.mrb[0].mxu0
        %v353 = vadd.f32 %v263, %v352
        %354 = vmatprep.mubr.f32.mxu0 0.0
        %355 = vmatmul.mubr.f32.gmra.mrb[0].mxu0 %v211
        %v356 = vpop.f32.mrb[0].mxu0
        %v357 = vadd.f32 %v259, %v356
        %v358 = vpop.f32.mrb[0].mxu0
        %v359 = vadd.f32 %v263, %v358
        %360 = vmatprep.mubr.f32.mxu0 0.0
        %361 = vmatmul.mubr.f32.gmra.mrb[0].mxu0 %v212
        %v362 = vpop.f32.mrb[0].mxu0
        %v363 = vadd.f32 %v259, %v362
        %v364 = vpop.f32.mrb[0].mxu0
        %v365 = vadd.f32 %v263, %v364
        %366 = vmatprep.mubr.f32.mxu0 0.0
        %367 = vmatmul.mubr.f32.gmra.mrb[0].mxu0 %v213
        %v368 = vpop.f32.mrb[0].mxu0
        %v369 = vadd.f32 %v259, %v368
        %v370 = vpop.f32.mrb[0].mxu0
        %v371 = vadd.f32 %v263, %v370
        %372 = vmatprep.mubr.f32.mxu0 0.0
        %373 = vmatmul.mubr.f32.gmra.mrb[0].mxu0 %v214
        %v374 = vpop.f32.mrb[0].mxu0
        %v375 = vadd.f32 %v259, %v374
        %v376 = vpop.f32.mrb[0].mxu0
        %v377 = vadd.f32 %v263, %v376
        %378 = vmatprep.mubr.f32.mxu0 0.0
        %379 = vmatmul.mubr.f32.gmra.mrb[0].mxu0 %v215
        %v380 = vpop.f32.mrb[0].mxu0
        %v381 = vadd.f32 %v259, %v380
        %v382 = vpop.f32.mrb[0].mxu0
        %v383 = vadd.f32 %v263, %v382
        %384 = vmatprep.mubr.f32.mxu0 0.0
        %385 = vmatmul.mubr.f32.gmra.mrb[0].mxu0 %v216
        %v386 = vpop.f32.mrb[0].mxu0
        %v387 = vadd.f32 %v259, %v386
        %v388 = vpop.f32.mrb[0].mxu0
        %v389 = vadd.f32 %v263, %v388
        %390 = vmatprep.mubr.f32.mxu0 0.0
        %391 = vmatmul.mubr.f32.gmra.mrb[0].mxu0 %v217
        %v392 = vpop.f32.mrb[0].mxu0
        %v393 = vadd.f32 %v259, %v392
        %v394 = vpop.f32.mrb[0].mxu0
        %v395 = vadd.f32 %v263, %v394
        %396 = vmatprep.mubr.f32.mxu0 0.0
        %397 = vmatmul.mubr.f32.gmra.mrb[0].mxu0 %v218
        %v398 = vpop.f32.mrb[0].mxu0
        %v399 = vadd.f32 %v259, %v398
        %v400 = vpop.f32.mrb[0].mxu0
        %v401 = vadd.f32 %v263, %v400
        %402 = vmatprep.mubr.f32.mxu0 0.0
        %403 = vmatmul.mubr.f32.gmra.mrb[0].mxu0 %v219
        %v404 = vpop.f32.mrb[0].mxu0
        %v405 = vadd.f32 %v259, %v404
        %v406 = vpop.f32.mrb[0].mxu0
        %v407 = vadd.f32 %v263, %v406
        %408 = vmatprep.mubr.f32.mxu0 0.0
        %409 = vmatmul.mubr.f32.gmra.mrb[0].mxu0 %v220
        %v410 = vpop.f32.mrb[0].mxu0
        %v411 = vadd.f32 %v259, %v410
        %v412 = vpop.f32.mrb[0].mxu0
        %v413 = vadd.f32 %v263, %v412
        %414 = vmatprep.mubr.f32.mxu0 0.0
        %415 = vmatmul.mubr.f32.gmra.mrb[0].mxu0 %v221
        %v416 = vpop.f32.mrb[0].mxu0
        %v417 = vadd.f32 %v259, %v416
        %v418 = vpop.f32.mrb[0].mxu0
        %v419 = vadd.f32 %v263, %v418
        %420 = vmatprep.mubr.f32.mxu0 0.0
        %421 = vmatmul.mubr.f32.gmra.mrb[0].mxu0 %v222
        %v422 = vpop.f32.mrb[0].mxu0
        %v423 = vadd.f32 %v259, %v422
        %v424 = vpop.f32.mrb[0].mxu0
        %v425 = vadd.f32 %v263, %v424
        %426 = vdwg.mxu0
        %v427 = vmax.f32 %v335, 0.0
        %v428 = vmax.f32 %v341, 0.0
        %v429 = vmax.f32 %v347, 0.0
        %v430 = vmax.f32 %v353, 0.0
        %v431 = vmax.f32 %v359, 0.0
        %v432 = vmax.f32 %v365, 0.0
        %v433 = vmax.f32 %v371, 0.0
        %v434 = vmax.f32 %v377, 0.0
        %v435 = vmax.f32 %v383, 0.0
        %v436 = vmax.f32 %v389, 0.0
        %v437 = vmax.f32 %v395, 0.0
        %v438 = vmax.f32 %v401, 0.0
        %v439 = vmax.f32 %v407, 0.0
        %v440 = vmax.f32 %v413, 0.0
        %v441 = vmax.f32 %v419, 0.0
        %v442 = vmax.f32 %v425, 0.0
        %v443 = vand.u32 2147483647, %v335
        %v444 = vand.u32 2147483647, %v341
        %v445 = vand.u32 2147483647, %v347
        %v446 = vand.u32 2147483647, %v353
        %v447 = vand.u32 2147483647, %v359
        %v448 = vand.u32 2147483647, %v365
        %v449 = vand.u32 2147483647, %v371
        %v450 = vand.u32 2147483647, %v377
        %v451 = vand.u32 2147483647, %v383
        %v452 = vand.u32 2147483647, %v389
        %v453 = vand.u32 2147483647, %v395
        %v454 = vand.u32 2147483647, %v401
        %v455 = vand.u32 2147483647, %v407
        %v456 = vand.u32 2147483647, %v413
        %v457 = vand.u32 2147483647, %v419
        %v458 = vand.u32 2147483647, %v425
        %v459 = vsub.f32 0.0, %v443
        %v460 = vsub.f32 0.0, %v444
        %v461 = vsub.f32 0.0, %v445
        %v462 = vsub.f32 0.0, %v446
        %v463 = vsub.f32 0.0, %v447
        %v464 = vsub.f32 0.0, %v448
        %v465 = vsub.f32 0.0, %v449
        %v466 = vsub.f32 0.0, %v450
        %v467 = vsub.f32 0.0, %v451
        %v468 = vsub.f32 0.0, %v452
        %v469 = vsub.f32 0.0, %v453
        %v470 = vsub.f32 0.0, %v454
        %v471 = vsub.f32 0.0, %v455
        %v472 = vsub.f32 0.0, %v456
        %v473 = vsub.f32 0.0, %v457
        %v474 = vsub.f32 0.0, %v458
        %v475 = vmul.f32 %v459, 1.442695
        %v476 = vpow.pop %v475
        %v477 = vmul.f32 %v460, 1.442695
        %v478 = vpow.pop %v477
        %v479 = vmul.f32 %v461, 1.442695
        %v480 = vpow.pop %v479
        %v481 = vmul.f32 %v462, 1.442695
        %v482 = vpow.pop %v481
        %v483 = vmul.f32 %v463, 1.442695
        %v484 = vpow.pop %v483
        %v485 = vmul.f32 %v464, 1.442695
        %v486 = vpow.pop %v485
        %v487 = vmul.f32 %v465, 1.442695
        %v488 = vpow.pop %v487
        %v489 = vmul.f32 %v466, 1.442695
        %v490 = vpow.pop %v489
        %v491 = vmul.f32 %v467, 1.442695
        %v492 = vpow.pop %v491
        %v493 = vmul.f32 %v468, 1.442695
        %v494 = vpow.pop %v493
        %v495 = vmul.f32 %v469, 1.442695
        %v496 = vpow.pop %v495
        %v497 = vmul.f32 %v470, 1.442695
        %v498 = vpow.pop %v497
        %v499 = vmul.f32 %v471, 1.442695
        %v500 = vpow.pop %v499
        %v501 = vmul.f32 %v472, 1.442695
        %v502 = vpow.pop %v501
        %v503 = vmul.f32 %v473, 1.442695
        %v504 = vpow.pop %v503
        %v505 = vmul.f32 %v474, 1.442695
        %v506 = vpow.pop %v505
        %v507 = vadd.f32 %v476, 1.0
        %v508 = vlog2.pop %v507
        %v509 = vmul.f32 %v508, 0.6931472
        %v510 = vmul.f32 -0.5, %v476
        %v511 = vadd.f32 %v510, 1.0
        %v512 = vmul.f32 %v511, %v476
        %v513 = vand.u32 2147483647, %v476
        %vm514 = vcmp.lt.f32.partialorder %v513, 0.0004427343
        %v515 = vsel %vm514, %v512, %v509
        %v516 = vadd.f32 %v478, 1.0
        %v517 = vlog2.pop %v516
        %v518 = vmul.f32 %v517, 0.6931472
        %v519 = vmul.f32 -0.5, %v478
        %v520 = vadd.f32 %v519, 1.0
        %v521 = vmul.f32 %v520, %v478
        %v522 = vand.u32 2147483647, %v478
        %vm523 = vcmp.lt.f32.partialorder %v522, 0.0004427343
        %v524 = vsel %vm523, %v521, %v518
        %v525 = vadd.f32 %v480, 1.0
        %v526 = vlog2.pop %v525
        %v527 = vmul.f32 %v526, 0.6931472
        %v528 = vmul.f32 -0.5, %v480
        %v529 = vadd.f32 %v528, 1.0
        %v530 = vmul.f32 %v529, %v480
        %v531 = vand.u32 2147483647, %v480
        %vm532 = vcmp.lt.f32.partialorder %v531, 0.0004427343
        %v533 = vsel %vm532, %v530, %v527
        %v534 = vadd.f32 %v482, 1.0
        %v535 = vlog2.pop %v534
        %v536 = vmul.f32 %v535, 0.6931472
        %v537 = vmul.f32 -0.5, %v482
        %v538 = vadd.f32 %v537, 1.0
        %v539 = vmul.f32 %v538, %v482
        %v540 = vand.u32 2147483647, %v482
        %vm541 = vcmp.lt.f32.partialorder %v540, 0.0004427343
        %v542 = vsel %vm541, %v539, %v536
        %v543 = vadd.f32 %v484, 1.0
        %v544 = vlog2.pop %v543
        %v545 = vmul.f32 %v544, 0.6931472
        %v546 = vmul.f32 -0.5, %v484
        %v547 = vadd.f32 %v546, 1.0
        %v548 = vmul.f32 %v547, %v484
        %v549 = vand.u32 2147483647, %v484
        %vm550 = vcmp.lt.f32.partialorder %v549, 0.0004427343
        %v551 = vsel %vm550, %v548, %v545
        %v552 = vadd.f32 %v486, 1.0
        %v553 = vlog2.pop %v552
        %v554 = vmul.f32 %v553, 0.6931472
        %v555 = vmul.f32 -0.5, %v486
        %v556 = vadd.f32 %v555, 1.0
        %v557 = vmul.f32 %v556, %v486
        %v558 = vand.u32 2147483647, %v486
        %vm559 = vcmp.lt.f32.partialorder %v558, 0.0004427343
        %v560 = vsel %vm559, %v557, %v554
        %v561 = vadd.f32 %v488, 1.0
        %v562 = vlog2.pop %v561
        %v563 = vmul.f32 %v562, 0.6931472
        %v564 = vmul.f32 -0.5, %v488
        %v565 = vadd.f32 %v564, 1.0
        %v566 = vmul.f32 %v565, %v488
        %v567 = vand.u32 2147483647, %v488
        %vm568 = vcmp.lt.f32.partialorder %v567, 0.0004427343
        %v569 = vsel %vm568, %v566, %v563
        %v570 = vadd.f32 %v490, 1.0
        %v571 = vlog2.pop %v570
        %v572 = vmul.f32 %v571, 0.6931472
        %v573 = vmul.f32 -0.5, %v490
        %v574 = vadd.f32 %v573, 1.0
        %v575 = vmul.f32 %v574, %v490
        %v576 = vand.u32 2147483647, %v490
        %vm577 = vcmp.lt.f32.partialorder %v576, 0.0004427343
        %v578 = vsel %vm577, %v575, %v572
        %v579 = vadd.f32 %v492, 1.0
        %v580 = vlog2.pop %v579
        %v581 = vmul.f32 %v580, 0.6931472
        %v582 = vmul.f32 -0.5, %v492
        %v583 = vadd.f32 %v582, 1.0
        %v584 = vmul.f32 %v583, %v492
        %v585 = vand.u32 2147483647, %v492
        %vm586 = vcmp.lt.f32.partialorder %v585, 0.0004427343
        %v587 = vsel %vm586, %v584, %v581
        %v588 = vadd.f32 %v494, 1.0
        %v589 = vlog2.pop %v588
        %v590 = vmul.f32 %v589, 0.6931472
        %v591 = vmul.f32 -0.5, %v494
        %v592 = vadd.f32 %v591, 1.0
        %v593 = vmul.f32 %v592, %v494
        %v594 = vand.u32 2147483647, %v494
        %vm595 = vcmp.lt.f32.partialorder %v594, 0.0004427343
        %v596 = vsel %vm595, %v593, %v590
        %v597 = vadd.f32 %v496, 1.0
        %v598 = vlog2.pop %v597
        %v599 = vmul.f32 %v598, 0.6931472
        %v600 = vmul.f32 -0.5, %v496
        %v601 = vadd.f32 %v600, 1.0
        %v602 = vmul.f32 %v601, %v496
        %v603 = vand.u32 2147483647, %v496
        %vm604 = vcmp.lt.f32.partialorder %v603, 0.0004427343
        %v605 = vsel %vm604, %v602, %v599
        %v606 = vadd.f32 %v498, 1.0
        %v607 = vlog2.pop %v606
        %v608 = vmul.f32 %v607, 0.6931472
        %v609 = vmul.f32 -0.5, %v498
        %v610 = vadd.f32 %v609, 1.0
        %v611 = vmul.f32 %v610, %v498
        %v612 = vand.u32 2147483647, %v498
        %vm613 = vcmp.lt.f32.partialorder %v612, 0.0004427343
        %v614 = vsel %vm613, %v611, %v608
        %v615 = vadd.f32 %v500, 1.0
        %v616 = vlog2.pop %v615
        %v617 = vmul.f32 %v616, 0.6931472
        %v618 = vmul.f32 -0.5, %v500
        %v619 = vadd.f32 %v618, 1.0
        %v620 = vmul.f32 %v619, %v500
        %v621 = vand.u32 2147483647, %v500
        %vm622 = vcmp.lt.f32.partialorder %v621, 0.0004427343
        %v623 = vsel %vm622, %v620, %v617
        %v624 = vadd.f32 %v502, 1.0
        %v625 = vlog2.pop %v624
        %v626 = vmul.f32 %v625, 0.6931472
        %v627 = vmul.f32 -0.5, %v502
        %v628 = vadd.f32 %v627, 1.0
        %v629 = vmul.f32 %v628, %v502
        %v630 = vand.u32 2147483647, %v502
        %vm631 = vcmp.lt.f32.partialorder %v630, 0.0004427343
        %v632 = vsel %vm631, %v629, %v626
        %v633 = vadd.f32 %v504, 1.0
        %v634 = vlog2.pop %v633
        %v635 = vmul.f32 %v634, 0.6931472
        %v636 = vmul.f32 -0.5, %v504
        %v637 = vadd.f32 %v636, 1.0
        %v638 = vmul.f32 %v637, %v504
        %v639 = vand.u32 2147483647, %v504
        %vm640 = vcmp.lt.f32.partialorder %v639, 0.0004427343
        %v641 = vsel %vm640, %v638, %v635
        %v642 = vadd.f32 %v506, 1.0
        %v643 = vlog2.pop %v642
        %v644 = vmul.f32 %v643, 0.6931472
        %v645 = vmul.f32 -0.5, %v506
        %v646 = vadd.f32 %v645, 1.0
        %v647 = vmul.f32 %v646, %v506
        %v648 = vand.u32 2147483647, %v506
        %vm649 = vcmp.lt.f32.partialorder %v648, 0.0004427343
        %v650 = vsel %vm649, %v647, %v644
        %v651 = vadd.f32 %v427, %v515
        %v652 = vadd.f32 %v428, %v524
        %v653 = vadd.f32 %v429, %v533
        %v654 = vadd.f32 %v430, %v542
        %v655 = vadd.f32 %v431, %v551
        %v656 = vadd.f32 %v432, %v560
        %v657 = vadd.f32 %v433, %v569
        %v658 = vadd.f32 %v434, %v578
        %v659 = vadd.f32 %v435, %v587
        %v660 = vadd.f32 %v436, %v596
        %v661 = vadd.f32 %v437, %v605
        %v662 = vadd.f32 %v438, %v614
        %v663 = vadd.f32 %v439, %v623
        %v664 = vadd.f32 %v440, %v632
        %v665 = vadd.f32 %v441, %v641
        %v666 = vadd.f32 %v442, %v650
        %v667 = vadd.f32 %v651, 1e-06
        %v668 = vadd.f32 %v652, 1e-06
        %v669 = vadd.f32 %v653, 1e-06
        %v670 = vadd.f32 %v654, 1e-06
        %v671 = vadd.f32 %v655, 1e-06
        %v672 = vadd.f32 %v656, 1e-06
        %v673 = vadd.f32 %v657, 1e-06
        %v674 = vadd.f32 %v658, 1e-06
        %v675 = vadd.f32 %v659, 1e-06
        %v676 = vadd.f32 %v660, 1e-06
        %v677 = vadd.f32 %v661, 1e-06
        %v678 = vadd.f32 %v662, 1e-06
        %v679 = vadd.f32 %v663, 1e-06
        %v680 = vadd.f32 %v664, 1e-06
        %v681 = vadd.f32 %v665, 1e-06
        %v682 = vadd.f32 %v666, 1e-06
        %683 = vst [vmem:[%s203] sm:$0xff] %v333
        %684 = vst [vmem:[%s203 + $0x10] sm:$0xff] %v339
        %685 = vst [vmem:[%s203 + $0x20] sm:$0xff] %v345
        %686 = vst [vmem:[%s203 + $0x30] sm:$0xff] %v351
        %687 = vst [vmem:[%s203 + $0x40] sm:$0xff] %v357
        %688 = vst [vmem:[%s203 + $0x50] sm:$0xff] %v363
        %689 = vst [vmem:[%s203 + $0x60] sm:$0xff] %v369
        %690 = vst [vmem:[%s203 + $0x70] sm:$0xff] %v375
        %691 = vst [vmem:[%s203 + $0x80] sm:$0xff] %v381
        %692 = vst [vmem:[%s203 + $0x90] sm:$0xff] %v387
        %693 = vst [vmem:[%s203 + $0xa0] sm:$0xff] %v393
        %694 = vst [vmem:[%s203 + $0xb0] sm:$0xff] %v399
        %695 = vst [vmem:[%s203 + $0xc0] sm:$0xff] %v405
        %696 = vst [vmem:[%s203 + $0xd0] sm:$0xff] %v411
        %697 = vst [vmem:[%s203 + $0xe0] sm:$0xff] %v417
        %698 = vst [vmem:[%s203 + $0xf0] sm:$0xff] %v423
        %699 = vst [vmem:[%s203 + $0x8] sm:$0xff] %v667
        %700 = vst [vmem:[%s203 + $0x18] sm:$0xff] %v668
        %701 = vst [vmem:[%s203 + $0x28] sm:$0xff] %v669
        %702 = vst [vmem:[%s203 + $0x38] sm:$0xff] %v670
        %703 = vst [vmem:[%s203 + $0x48] sm:$0xff] %v671
        %704 = vst [vmem:[%s203 + $0x58] sm:$0xff] %v672
        %705 = vst [vmem:[%s203 + $0x68] sm:$0xff] %v673
        %706 = vst [vmem:[%s203 + $0x78] sm:$0xff] %v674
        %707 = vst [vmem:[%s203 + $0x88] sm:$0xff] %v675
        %708 = vst [vmem:[%s203 + $0x98] sm:$0xff] %v676
        %709 = vst [vmem:[%s203 + $0xa8] sm:$0xff] %v677
        %710 = vst [vmem:[%s203 + $0xb8] sm:$0xff] %v678
        %711 = vst [vmem:[%s203 + $0xc8] sm:$0xff] %v679
        %712 = vst [vmem:[%s203 + $0xd8] sm:$0xff] %v680
        %713 = vst [vmem:[%s203 + $0xe8] sm:$0xff] %v681
        %714 = vst [vmem:[%s203 + $0xf8] sm:$0xff] %v682
        %s715 = sand.u32 %s97, 1
        %s716 = scalar_lea.sflag [#allocation4], %s715
        %s717 = sand.u32 %s97, 1
        %s718 = smul.addr %s717, 256
        %s719 = scalar_lea.vmem [#allocation7], %s718
        // Predicated region
        $region41: #{dense_normal.1} parent=31 // pred_check
          %p720 = pneg %p107
        $region42: #{dense_normal.1} parent=31 // pred_check_branch
          %722 = sbr.rel (%p720) target = $region44
        $region43: #{dense_normal.1} parent=31 // pred_region
          %s723 = smul.u32 16, %s21
          %s725 = ssub.s32 4096, 4096
          %726 = vsyncadd %s716, %s725
          %s727 = smul.addr %s723, 2
          %s728 = smul.addr %s727, 128
          %s729 = scalar_lea.hbm %s3, %s728
          %s730 = sshll.u32 %s719, 4
          %s731 = int_to_ptr.vmem [resolvable:$true] %s730
          %736 = dma.vmem_to_hbm [thread:$0]  %s731, 4096, %s729, %s716, 256, 256, 16
        $region44: #{dense_normal.1} parent=31 // pred_fallthru
          _
      $region32: #{dense_normal.1} parent=5 // pred_fallthru
        _
      %p737 = scmp.le.s32.totalorder 2, %s16
      // Predicated region
      $region45: #{dense_normal.1} parent=5 // pred_check
        %p738 = pneg %p737
      $region46: #{dense_normal.1} parent=5 // pred_check_branch
        %740 = sbr.rel (%p738) target = $region48
      $region47: #{dense_normal.1} parent=5 // pred_region
        %s741 = ssub.s32 %s16, 2
        // Predicated region
        $region49: #{dense_normal.1} parent=47 // pred_check
          %p742 = pneg %p113
        $region50: #{dense_normal.1} parent=47 // pred_check_branch
          %744 = sbr.rel (%p742) target = $region52
        $region51: #{dense_normal.1} parent=47 // pred_region
          %s745 = sand.u32 %s98, 1
          %s746 = scalar_lea.sflag [#allocation4], %s745
          %s747 = sand.u32 %s98, 1
          %s748 = smul.addr %s747, 256
          %s749 = scalar_lea.vmem [#allocation7], %s748
          %750 = dma.done %s746, 4096
        $region52: #{dense_normal.1} parent=47 // pred_fallthru
          _
      $region48: #{dense_normal.1} parent=5 // pred_fallthru
        _
    $region6: #{dense_normal.1} parent=1 // loop_footer
      %s20 = sadd.s32 1, %s16
    $region7: #{dense_normal.1} parent=1 // loop_footer_branch
      %15 = sbr.rel target = $region3
    $region8: #{dense_normal.1} parent=1 // loop_exit
      _
    %751 = vsyncpa [#allocation3], 1
    %s752 = scalar_lea.sflag [#allocation3], 1
    %753 = vsyncpa %s752, 1
    %754 = vsyncpa [#allocation6], 1
    %755 = vsyncpa [#allocation4], 1
    %s756 = scalar_lea.sflag [#allocation4], 1
    %757 = vsyncpa %s756, 1

</llo_original>
